<compile_context>
chip_gen: v7x
topology: tpu7x:2x2x1
jax: 0.10.0
libtpu: 0.0.40
codegen_flags: <defaults>
</compile_context>

<pallas_src>
import functools

import jax
import jax.numpy as jnp
from jax.experimental import pallas as pl
from jax.experimental.pallas import tpu as pltpu

EPS = 1e-8


def _denorm_kernel(x_ref, scale_ref, offset_ref, gamma_ref, beta_ref, o_ref, *,
                   alpha, inv_count):
    # x_ref:      (N, TC, HW)   native NCHW layout with H*W flattened onto lanes
    # scale_ref:  (N, TC, 1)    per-(sample, channel) denorm scale
    # offset_ref: (N, TC, 1)    per-(sample, channel) denorm offset
    # gamma_ref:  (1, TC, 1)    BN affine weight
    # beta_ref:   (1, TC, 1)    BN affine bias
    x = x_ref[...].astype(jnp.float32)

    # One-pass per-channel statistics over (N, HW): sum and sum of squares.
    s1 = jnp.sum(jnp.sum(x, axis=2, keepdims=True), axis=0, keepdims=True)      # (1, TC, 1)
    s2 = jnp.sum(jnp.sum(x * x, axis=2, keepdims=True), axis=0, keepdims=True)  # (1, TC, 1)
    mean = s1 * inv_count
    var = jnp.maximum(s2 * inv_count - mean * mean, 0.0)                         # biased var
    inv_std = jax.lax.rsqrt(var + EPS)                                           # EUP slot

    # Fold BN affine + denorm scale/offset + alpha blend into one affine: out = x*A + B.
    g = gamma_ref[...] * inv_std                                                 # (1, TC, 1)
    scale = scale_ref[...]
    offset = offset_ref[...]
    a0 = scale * g                                                               # (N, TC, 1)
    b0 = offset + scale * (beta_ref[...] - mean * g)                             # (N, TC, 1)
    if alpha == 1.0:          # trace-time specialization (alpha is a Python float)
        A, B = a0, b0
    else:
        A = alpha * a0 + (1.0 - alpha)
        B = alpha * b0

    # Hot path: 1 mul + 1 add per element, single cast-and-store.
    o_ref[...] = (x * A + B).astype(o_ref.dtype)


def _pick_channel_tile(C, N, HW, itemsize=4, target_bytes=2 * 1024 * 1024):
    """Largest channel tile that divides C, satisfies sublane tiling (TC==C or TC%8==0),
    and keeps the fp32 block under ~2 MiB so double-buffered in/out + temporaries fit
    comfortably within every generation's scoped-VMEM limit."""
    valid = [tc for tc in range(1, C + 1)
             if C % tc == 0 and (tc == C or tc % 8 == 0)]
    fitting = [tc for tc in valid if N * tc * HW * itemsize <= target_bytes]
    return max(fitting) if fitting else min(valid)


def denorm(x_nchw, scale, offset, gamma, beta, alpha=1.0, channel_tile=None):
    """x_nchw: (N, C, H, W); scale/offset: (N, C, 1, 1); gamma/beta: (C,); alpha: python float."""
    N, C, H, W = x_nchw.shape
    HW = H * W

    # Free reshapes only (contiguous merges / squeezes) — no HBM transpose pass.
    x_r = x_nchw.reshape(N, C, HW)
    scale_r = scale.reshape(N, C, 1).astype(jnp.float32)
    offset_r = offset.reshape(N, C, 1).astype(jnp.float32)
    gamma_r = gamma.reshape(1, C, 1).astype(jnp.float32)
    beta_r = beta.reshape(1, C, 1).astype(jnp.float32)

    tc = channel_tile if channel_tile is not None else _pick_channel_tile(C, N, HW)
    assert C % tc == 0 and (tc == C or tc % 8 == 0), \
        "channel tile must divide C and be a multiple of 8 (or equal C)"

    kernel = functools.partial(_denorm_kernel,
                               alpha=float(alpha),
                               inv_count=1.0 / float(N * HW))

    out_r = pl.pallas_call(
        kernel,
        out_shape=jax.ShapeDtypeStruct((N, C, HW), x_nchw.dtype),
        grid=(C // tc,),
        in_specs=[
            pl.BlockSpec((N, tc, HW), lambda c: (0, c, 0)),  # x
            pl.BlockSpec((N, tc, 1), lambda c: (0, c, 0)),   # scale
            pl.BlockSpec((N, tc, 1), lambda c: (0, c, 0)),   # offset
            pl.BlockSpec((1, tc, 1), lambda c: (0, c, 0)),   # gamma
            pl.BlockSpec((1, tc, 1), lambda c: (0, c, 0)),   # beta
        ],
        out_specs=pl.BlockSpec((N, tc, HW), lambda c: (0, c, 0)),
        compiler_params=pltpu.CompilerParams(
            dimension_semantics=("parallel",),       # megacore: split channels across TCs
            vmem_limit_bytes=32 * 1024 * 1024,       # explicit, safe on v5e/v6e/v7x
        ),
    )(x_r, scale_r, offset_r, gamma_r, beta_r)

    return out_r.reshape(N, C, H, W)


def _reference(x, scale, offset, gamma, beta, alpha):
    # Pure-JAX reference of the PyTorch forward (training-mode BN + denorm + blend).
    mean = jnp.mean(x, axis=(0, 2, 3), keepdims=True)
    var = jnp.mean((x - mean) ** 2, axis=(0, 2, 3), keepdims=True)
    normed = (x - mean) / jnp.sqrt(var + EPS)
    normed = normed * gamma.reshape(1, -1, 1, 1) + beta.reshape(1, -1, 1, 1)
    out = normed * scale + offset
    if alpha == 1.0:
        return out
    return alpha * out + (1.0 - alpha) * x


if __name__ == "__main__":
    key = jax.random.PRNGKey(0)
    k1, k2, k3 = jax.random.split(key, 3)

    N, C, H, W = 2, 16, 16, 16
    x = jax.random.normal(k1, (N, C, H, W), dtype=jnp.float32)
    scale = jax.random.normal(k2, (N, C, 1, 1), dtype=jnp.float32)
    offset = jax.random.normal(k3, (N, C, 1, 1), dtype=jnp.float32)

    # BN affine params (PyTorch default init: weight=1, bias=0).
    gamma = jnp.ones((C,), dtype=jnp.float32)
    beta = jnp.zeros((C,), dtype=jnp.float32)

    # Non-trivial blend path with an explicit 2-step channel grid (tile=8).
    alpha = 0.7
    out = denorm(x, scale, offset, gamma, beta, alpha, channel_tile=8)
    out = jax.block_until_ready(out)
    ref = _reference(x, scale, offset, gamma, beta, alpha)
    assert out.shape == (N, C, H, W)
    assert jnp.allclose(out, ref, atol=1e-4, rtol=1e-4), "mismatch vs reference (alpha=0.7)"

    # alpha == 1.0 specialized path with auto-picked tile.
    out1 = jax.block_until_ready(denorm(x, scale, offset, gamma, beta, 1.0))
    ref1 = _reference(x, scale, offset, gamma, beta, 1.0)
    assert jnp.allclose(out1, ref1, atol=1e-4, rtol=1e-4), "mismatch vs reference (alpha=1.0)"

    print("KERNEL_OK")
</pallas_src>

<mosaic_0001>
module attributes {stable_mosaic.version = 11 : i64} {
  func.func @_denorm_kernel(%arg0: i32, %arg1: memref<2x8x256xf32, #tpu.memory_space<vmem>>, %arg2: memref<2x8x1xf32, #tpu.memory_space<vmem>>, %arg3: memref<2x8x1xf32, #tpu.memory_space<vmem>>, %arg4: memref<1x8x1xf32, #tpu.memory_space<vmem>>, %arg5: memref<1x8x1xf32, #tpu.memory_space<vmem>>, %arg6: memref<2x8x256xf32, #tpu.memory_space<vmem>>) attributes {dimension_semantics = [#tpu.dimension_semantics<parallel>], iteration_bounds = array<i64: 2>, scalar_prefetch = 0 : i64, scratch_operands = 0 : i64, tpu.core_type = #tpu.core_type<tc>, window_params = [{transform_indices = @transform_0, window_bounds = array<i64: 2, 8, 256>}, {transform_indices = @transform_1, window_bounds = array<i64: 2, 8, 1>}, {transform_indices = @transform_2, window_bounds = array<i64: 2, 8, 1>}, {transform_indices = @transform_3, window_bounds = array<i64: 1, 8, 1>}, {transform_indices = @transform_4, window_bounds = array<i64: 1, 8, 1>}, {transform_indices = @transform_5, window_bounds = array<i64: 2, 8, 256>}]} {
    %c0 = arith.constant 0 : index
    %c0_0 = arith.constant 0 : index
    %c0_1 = arith.constant 0 : index
    %0 = vector.load %arg1[%c0, %c0_0, %c0_1] : memref<2x8x256xf32, #tpu.memory_space<vmem>>, vector<2x8x256xf32>
    %cst = arith.constant dense<0.000000e+00> : vector<2x8xf32>
    %1 = vector.multi_reduction <add>, %0, %cst [2] : vector<2x8x256xf32> to vector<2x8xf32>
    %2 = vector.shape_cast %1 : vector<2x8xf32> to vector<2x8x1xf32>
    %cst_2 = arith.constant dense<0.000000e+00> : vector<8x1xf32>
    %3 = vector.multi_reduction <add>, %2, %cst_2 [0] : vector<2x8x1xf32> to vector<8x1xf32>
    %4 = vector.shape_cast %3 : vector<8x1xf32> to vector<1x8x1xf32>
    %5 = arith.mulf %0, %0 : vector<2x8x256xf32>
    %cst_3 = arith.constant dense<0.000000e+00> : vector<2x8xf32>
    %6 = vector.multi_reduction <add>, %5, %cst_3 [2] : vector<2x8x256xf32> to vector<2x8xf32>
    %7 = vector.shape_cast %6 : vector<2x8xf32> to vector<2x8x1xf32>
    %cst_4 = arith.constant dense<0.000000e+00> : vector<8x1xf32>
    %8 = vector.multi_reduction <add>, %7, %cst_4 [0] : vector<2x8x1xf32> to vector<8x1xf32>
    %9 = vector.shape_cast %8 : vector<8x1xf32> to vector<1x8x1xf32>
    %cst_5 = arith.constant 0.001953125 : f32
    %10 = vector.broadcast %cst_5 : f32 to vector<1x8x1xf32>
    %11 = arith.mulf %4, %10 : vector<1x8x1xf32>
    %cst_6 = arith.constant 0.001953125 : f32
    %12 = vector.broadcast %cst_6 : f32 to vector<1x8x1xf32>
    %13 = arith.mulf %9, %12 : vector<1x8x1xf32>
    %14 = arith.mulf %11, %11 : vector<1x8x1xf32>
    %15 = arith.subf %13, %14 : vector<1x8x1xf32>
    %cst_7 = arith.constant 0.000000e+00 : f32
    %16 = vector.broadcast %cst_7 : f32 to vector<1x8x1xf32>
    %17 = arith.maximumf %15, %16 : vector<1x8x1xf32>
    %cst_8 = arith.constant 9.99999993E-9 : f32
    %18 = vector.broadcast %cst_8 : f32 to vector<1x8x1xf32>
    %19 = arith.addf %17, %18 : vector<1x8x1xf32>
    %20 = math.rsqrt %19 : vector<1x8x1xf32>
    %c0_9 = arith.constant 0 : index
    %c0_10 = arith.constant 0 : index
    %c0_11 = arith.constant 0 : index
    %21 = vector.load %arg4[%c0_9, %c0_10, %c0_11] : memref<1x8x1xf32, #tpu.memory_space<vmem>>, vector<1x8x1xf32>
    %22 = arith.mulf %21, %20 : vector<1x8x1xf32>
    %c0_12 = arith.constant 0 : index
    %c0_13 = arith.constant 0 : index
    %c0_14 = arith.constant 0 : index
    %23 = vector.load %arg2[%c0_12, %c0_13, %c0_14] : memref<2x8x1xf32, #tpu.memory_space<vmem>>, vector<2x8x1xf32>
    %c0_15 = arith.constant 0 : index
    %c0_16 = arith.constant 0 : index
    %c0_17 = arith.constant 0 : index
    %24 = vector.load %arg3[%c0_15, %c0_16, %c0_17] : memref<2x8x1xf32, #tpu.memory_space<vmem>>, vector<2x8x1xf32>
    %25 = vector.broadcast %22 : vector<1x8x1xf32> to vector<2x8x1xf32>
    %26 = arith.mulf %23, %25 : vector<2x8x1xf32>
    %c0_18 = arith.constant 0 : index
    %c0_19 = arith.constant 0 : index
    %c0_20 = arith.constant 0 : index
    %27 = vector.load %arg5[%c0_18, %c0_19, %c0_20] : memref<1x8x1xf32, #tpu.memory_space<vmem>>, vector<1x8x1xf32>
    %28 = arith.mulf %11, %22 : vector<1x8x1xf32>
    %29 = arith.subf %27, %28 : vector<1x8x1xf32>
    %30 = vector.broadcast %29 : vector<1x8x1xf32> to vector<2x8x1xf32>
    %31 = arith.mulf %23, %30 : vector<2x8x1xf32>
    %32 = arith.addf %24, %31 : vector<2x8x1xf32>
    %cst_21 = arith.constant 0.699999988 : f32
    %33 = vector.broadcast %cst_21 : f32 to vector<2x8x1xf32>
    %34 = arith.mulf %33, %26 : vector<2x8x1xf32>
    %cst_22 = arith.constant 3.000000e-01 : f32
    %35 = vector.broadcast %cst_22 : f32 to vector<2x8x1xf32>
    %36 = arith.addf %34, %35 : vector<2x8x1xf32>
    %cst_23 = arith.constant 0.699999988 : f32
    %37 = vector.broadcast %cst_23 : f32 to vector<2x8x1xf32>
    %38 = arith.mulf %37, %32 : vector<2x8x1xf32>
    %39 = vector.broadcast %36 : vector<2x8x1xf32> to vector<2x8x256xf32>
    %40 = arith.mulf %0, %39 : vector<2x8x256xf32>
    %41 = vector.broadcast %38 : vector<2x8x1xf32> to vector<2x8x256xf32>
    %42 = arith.addf %40, %41 : vector<2x8x256xf32>
    %c0_24 = arith.constant 0 : index
    %c0_25 = arith.constant 0 : index
    %c0_26 = arith.constant 0 : index
    %43 = vector.load %arg6[%c0_24, %c0_25, %c0_26] : memref<2x8x256xf32, #tpu.memory_space<vmem>>, vector<2x8x256xf32>
    tpu.vector_store %arg6[%c0_24, %c0_25, %c0_26], %42 {strides = array<i32>} : memref<2x8x256xf32, #tpu.memory_space<vmem>>, vector<2x8x256xf32>,
    return
  }
  func.func @transform_0(%arg0: i32) -> (i32, i32, i32) {
    %c0_i32 = arith.constant 0 : i32
    %c0_i32_0 = arith.constant 0 : i32
    %c0_i32_1 = arith.constant 0 : i32
    return %c0_i32, %arg0, %c0_i32_0 : i32, i32, i32
  }
  func.func @transform_1(%arg0: i32) -> (i32, i32, i32) {
    %c0_i32 = arith.constant 0 : i32
    %c0_i32_0 = arith.constant 0 : i32
    %c0_i32_1 = arith.constant 0 : i32
    return %c0_i32, %arg0, %c0_i32_0 : i32, i32, i32
  }
  func.func @transform_2(%arg0: i32) -> (i32, i32, i32) {
    %c0_i32 = arith.constant 0 : i32
    %c0_i32_0 = arith.constant 0 : i32
    %c0_i32_1 = arith.constant 0 : i32
    return %c0_i32, %arg0, %c0_i32_0 : i32, i32, i32
  }
  func.func @transform_3(%arg0: i32) -> (i32, i32, i32) {
    %c0_i32 = arith.constant 0 : i32
    %c0_i32_0 = arith.constant 0 : i32
    %c0_i32_1 = arith.constant 0 : i32
    return %c0_i32, %arg0, %c0_i32_0 : i32, i32, i32
  }
  func.func @transform_4(%arg0: i32) -> (i32, i32, i32) {
    %c0_i32 = arith.constant 0 : i32
    %c0_i32_0 = arith.constant 0 : i32
    %c0_i32_1 = arith.constant 0 : i32
    return %c0_i32, %arg0, %c0_i32_0 : i32, i32, i32
  }
  func.func @transform_5(%arg0: i32) -> (i32, i32, i32) {
    %c0_i32 = arith.constant 0 : i32
    %c0_i32_0 = arith.constant 0 : i32
    %c0_i32_1 = arith.constant 0 : i32
    return %c0_i32, %arg0, %c0_i32_0 : i32, i32, i32
  }
}

</mosaic_0001>

<llo_original>
// kernel: tpu_custom_call.1
$region0: #{tpu_custom_call.1}
  #allocation0 [shape = 'u32[]', space=smem, size = 0x4, offset = 0x4, fixed_abs, tag = 'smem constant byte address 0x4 - core index']
  #allocation1 [shape = 'u32[144,128]{1,0:T(1,128)}', space=vmem, size = 0x12000, scoped, tag = 'internal scratch']
  %s0 = inlined_call_operand.vmem [shape: f32[2,16,256], index: 0, kind: input, shape index: {}]
  %s1 = inlined_call_operand.vmem [shape: f32[2,16,1], index: 1, kind: input, shape index: {}]
  %s2 = inlined_call_operand.vmem [shape: f32[2,16,1], index: 2, kind: input, shape index: {}]
  %s3 = inlined_call_operand.vmem [shape: f32[1,16,1], index: 3, kind: input, shape index: {}]
  %s4 = inlined_call_operand.vmem [shape: f32[1,16,1], index: 4, kind: input, shape index: {}]
  %s5 = inlined_call_operand.hbm [shape: f32[2,16,256], index: 5, kind: output, shape index: {}]
  %s6 = sld [smem:[#allocation0]]
  $region152: #{tpu_custom_call.1} parent=0
    _
  %s8 = ssub.s32 1, %s6
  %s9 = scalar_select 0, %s8, %s6
  $region1: #{tpu_custom_call.1} parent=0
    #allocation2 [shape = 'u8[32768]{0}', space=vmem, size = 0x8000, scoped, tag = 'input window, operand 0']
    #allocation3 [shape = 'u8[16384]{0}', space=vmem, size = 0x4000, scoped, tag = 'input window, operand 1']
    #allocation4 [shape = 'u8[16384]{0}', space=vmem, size = 0x4000, scoped, tag = 'input window, operand 2']
    #allocation5 [shape = 'u8[32768]{0}', space=vmem, size = 0x8000, scoped, tag = 'output window, operand 0']
    #allocation6 [shape = 's32[2]{0}', space=sflag, size = 0x8, scoped, tag = 'scoped memory for tpu_custom_call.1']
    %10 = vsyncpa [#allocation6], 0
    %s11 = scalar_lea.sflag [#allocation6], 1
    %12 = vsyncpa %s11, 0
    loop: start=0, step=1, limit=4
    $region2: #{tpu_custom_call.1} parent=1 // loop_pre_header
      _
    $region3: #{tpu_custom_call.1} parent=1 // loop_header
      %s14 = sphi 0, %s18
      %p15 = scmp.ge.s32.totalorder %s14, 4
      %s24 = sphi 0, %s26
      %s27 = sphi 0, %s24
      %s28 = sphi 0, %s27
      %s44 = sphi 0, %s28
      %s50 = sphi 0, %s52
      %s53 = sphi 0, %s50
      %s54 = sphi 0, %s53
      %s70 = sphi 0, %s54
      %s76 = sphi 0, %s78
      %s79 = sphi 0, %s76
      %s80 = sphi 0, %s79
      %s96 = sphi 0, %s80
      %s102 = sphi 0, %s104
      %s105 = sphi 0, %s102
      %s106 = sphi 0, %s105
      %s122 = sphi 0, %s106
      %s128 = sphi 0, %s130
      %s131 = sphi 0, %s128
      %s132 = sphi 0, %s131
      %s148 = sphi 0, %s132
      %s154 = sphi 0, %s156
      %s157 = sphi 0, %s154
      %s158 = sphi 0, %s157
      %s174 = sphi 0, %s158
    $region4: #{tpu_custom_call.1} parent=1 // loop_header_branch
      %17 = sbr.rel (%p15) target = $region8
    $region5: #{tpu_custom_call.1} parent=1 // loop_body
      %s19 = ssub.s32 %s14, 1
      %s20 = ssub.s32 %s14, 2
      %s21 = sadd.s32 %s14, 1
      %s22 = ssub.s32 %s14, %s21
      %p23 = scmp.eq.s32.totalorder %s22, 0
      %s25 = sadd.s32 %s24, 1
      %s26 = scalar_select %p23, %s24, %s25
      %p29 = pneg %p23
      %p30 = scmp.eq.s32.totalorder %s14, 1
      %p31 = por %p29, %p30
      %p32 = scmp.ne.s32.totalorder %s24, %s27
      %p33 = scmp.eq.s32.totalorder %s14, 0
      %p34 = por %p32, %p33
      %p35 = scmp.ne.s32.totalorder %s24, %s27
      %p36 = scmp.eq.s32.totalorder %s19, 1
      %p37 = por %p35, %p36
      %p38 = scmp.ne.s32.totalorder %s27, %s28
      %p39 = scmp.eq.s32.totalorder %s19, 0
      %p40 = por %p38, %p39
      %p41 = scmp.ne.s32.totalorder %s27, %s28
      %p42 = scmp.eq.s32.totalorder %s20, 1
      %p43 = por %p41, %p42
      %p45 = scmp.ne.s32.totalorder %s28, %s44
      %p46 = scmp.eq.s32.totalorder %s20, 0
      %p47 = por %p45, %p46
      %s48 = ssub.s32 %s14, %s21
      %p49 = scmp.eq.s32.totalorder %s48, 0
      %s51 = sadd.s32 %s50, 1
      %s52 = scalar_select %p49, %s50, %s51
      %p55 = pneg %p49
      %p56 = scmp.eq.s32.totalorder %s14, 1
      %p57 = por %p55, %p56
      %p58 = scmp.ne.s32.totalorder %s50, %s53
      %p59 = scmp.eq.s32.totalorder %s14, 0
      %p60 = por %p58, %p59
      %p61 = scmp.ne.s32.totalorder %s50, %s53
      %p62 = scmp.eq.s32.totalorder %s19, 1
      %p63 = por %p61, %p62
      %p64 = scmp.ne.s32.totalorder %s53, %s54
      %p65 = scmp.eq.s32.totalorder %s19, 0
      %p66 = por %p64, %p65
      %p67 = scmp.ne.s32.totalorder %s53, %s54
      %p68 = scmp.eq.s32.totalorder %s20, 1
      %p69 = por %p67, %p68
      %p71 = scmp.ne.s32.totalorder %s54, %s70
      %p72 = scmp.eq.s32.totalorder %s20, 0
      %p73 = por %p71, %p72
      %s74 = ssub.s32 %s14, %s21
      %p75 = scmp.eq.s32.totalorder %s74, 0
      %s77 = sadd.s32 %s76, 1
      %s78 = scalar_select %p75, %s76, %s77
      %p81 = pneg %p75
      %p82 = scmp.eq.s32.totalorder %s14, 1
      %p83 = por %p81, %p82
      %p84 = scmp.ne.s32.totalorder %s76, %s79
      %p85 = scmp.eq.s32.totalorder %s14, 0
      %p86 = por %p84, %p85
      %p87 = scmp.ne.s32.totalorder %s76, %s79
      %p88 = scmp.eq.s32.totalorder %s19, 1
      %p89 = por %p87, %p88
      %p90 = scmp.ne.s32.totalorder %s79, %s80
      %p91 = scmp.eq.s32.totalorder %s19, 0
      %p92 = por %p90, %p91
      %p93 = scmp.ne.s32.totalorder %s79, %s80
      %p94 = scmp.eq.s32.totalorder %s20, 1
      %p95 = por %p93, %p94
      %p97 = scmp.ne.s32.totalorder %s80, %s96
      %p98 = scmp.eq.s32.totalorder %s20, 0
      %p99 = por %p97, %p98
      %s100 = ssub.s32 %s14, %s21
      %p101 = scmp.eq.s32.totalorder %s100, 0
      %s103 = sadd.s32 %s102, 1
      %s104 = scalar_select %p101, %s102, %s103
      %p107 = pneg %p101
      %p108 = scmp.eq.s32.totalorder %s14, 1
      %p109 = por %p107, %p108
      %p110 = scmp.ne.s32.totalorder %s102, %s105
      %p111 = scmp.eq.s32.totalorder %s14, 0
      %p112 = por %p110, %p111
      %p113 = scmp.ne.s32.totalorder %s102, %s105
      %p114 = scmp.eq.s32.totalorder %s19, 1
      %p115 = por %p113, %p114
      %p116 = scmp.ne.s32.totalorder %s105, %s106
      %p117 = scmp.eq.s32.totalorder %s19, 0
      %p118 = por %p116, %p117
      %p119 = scmp.ne.s32.totalorder %s105, %s106
      %p120 = scmp.eq.s32.totalorder %s20, 1
      %p121 = por %p119, %p120
      %p123 = scmp.ne.s32.totalorder %s106, %s122
      %p124 = scmp.eq.s32.totalorder %s20, 0
      %p125 = por %p123, %p124
      %s126 = ssub.s32 %s14, %s21
      %p127 = scmp.eq.s32.totalorder %s126, 0
      %s129 = sadd.s32 %s128, 1
      %s130 = scalar_select %p127, %s128, %s129
      %p133 = pneg %p127
      %p134 = scmp.eq.s32.totalorder %s14, 1
      %p135 = por %p133, %p134
      %p136 = scmp.ne.s32.totalorder %s128, %s131
      %p137 = scmp.eq.s32.totalorder %s14, 0
      %p138 = por %p136, %p137
      %p139 = scmp.ne.s32.totalorder %s128, %s131
      %p140 = scmp.eq.s32.totalorder %s19, 1
      %p141 = por %p139, %p140
      %p142 = scmp.ne.s32.totalorder %s131, %s132
      %p143 = scmp.eq.s32.totalorder %s19, 0
      %p144 = por %p142, %p143
      %p145 = scmp.ne.s32.totalorder %s131, %s132
      %p146 = scmp.eq.s32.totalorder %s20, 1
      %p147 = por %p145, %p146
      %p149 = scmp.ne.s32.totalorder %s132, %s148
      %p150 = scmp.eq.s32.totalorder %s20, 0
      %p151 = por %p149, %p150
      %s152 = ssub.s32 %s14, %s21
      %p153 = scmp.eq.s32.totalorder %s152, 0
      %s155 = sadd.s32 %s154, 1
      %s156 = scalar_select %p153, %s154, %s155
      %p159 = pneg %p153
      %p160 = scmp.eq.s32.totalorder %s14, 1
      %p161 = por %p159, %p160
      %p162 = scmp.ne.s32.totalorder %s154, %s157
      %p163 = scmp.eq.s32.totalorder %s14, 0
      %p164 = por %p162, %p163
      %p165 = scmp.ne.s32.totalorder %s154, %s157
      %p166 = scmp.eq.s32.totalorder %s19, 1
      %p167 = por %p165, %p166
      %p168 = scmp.ne.s32.totalorder %s157, %s158
      %p169 = scmp.eq.s32.totalorder %s19, 0
      %p170 = por %p168, %p169
      %p171 = scmp.ne.s32.totalorder %s157, %s158
      %p172 = scmp.eq.s32.totalorder %s20, 1
      %p173 = por %p171, %p172
      %p175 = scmp.ne.s32.totalorder %s158, %s174
      %p176 = scmp.eq.s32.totalorder %s20, 0
      %p177 = por %p175, %p176
      %p178 = scmp.le.s32.totalorder 1, %s14
      %p179 = scmp.lt.s32.totalorder %s14, 3
      %p180 = pnand %p178, %p179
      %p181 = pneg %p180
      // Predicated region
      $region9: #{tpu_custom_call.1} parent=5 // pred_check
        _
      $region10: #{tpu_custom_call.1} parent=5 // pred_check_branch
        %183 = sbr.rel (%p180) target = $region12
      $region11: #{tpu_custom_call.1} parent=5 // pred_region
        %s184 = ssub.s32 %s14, 1
      $region12: #{tpu_custom_call.1} parent=5 // pred_fallthru
        _
      %p185 = scmp.lt.s32.totalorder %s14, 2
      // Predicated region
      $region13: #{tpu_custom_call.1} parent=5 // pred_check
        %p186 = pneg %p185
      $region14: #{tpu_custom_call.1} parent=5 // pred_check_branch
        %188 = sbr.rel (%p186) target = $region16
      $region15: #{tpu_custom_call.1} parent=5 // pred_region
        // Predicated region
        $region17: #{tpu_custom_call.1} parent=15 // pred_check
          %p189 = pneg %p34
        $region18: #{tpu_custom_call.1} parent=15 // pred_check_branch
          %191 = sbr.rel (%p189) target = $region20
        $region19: #{tpu_custom_call.1} parent=15 // pred_region
          %s192 = sand.u32 %s24, 1
          %s193 = sand.u32 %s24, 1
          %s194 = smul.addr %s193, 32
          %s195 = scalar_lea.vmem [#allocation2], %s194
          %s196 = smul.addr %s14, 2
          %s197 = smul.addr %s196, 8
          %s198 = scalar_lea.vmem %s0, %s197
          // Predicated region
          $region21: #{tpu_custom_call.1} parent=19 // pred_check
            _
          $region22: #{tpu_custom_call.1} parent=19 // pred_check_branch
            %200 = sbr.rel (0) target = $region24
          $region23: #{tpu_custom_call.1} parent=19 // pred_region
            // Predicated region
            $region25: #{tpu_custom_call.1} parent=23 // pred_check
              _
            $region26: #{tpu_custom_call.1} parent=23 // pred_check_branch
              %202 = sbr.rel (0) target = $region28
            $region27: #{tpu_custom_call.1} parent=23 // pred_region
              loop: start=0, step=1, limit=1
              $region29: #{tpu_custom_call.1} parent=27 // loop_pre_header
                _
              $region30: #{tpu_custom_call.1} parent=27 // loop_header
                %s204 = sphi 0, %s208
                %p205 = scmp.ge.s32.totalorder %s204, 1
                %s209 = sphi %s198, %s198
                %s210 = sphi %s195, %s195
              $region31: #{tpu_custom_call.1} parent=27 // loop_header_branch
                %207 = sbr.rel (%p205) target = $region35
              $region32: #{tpu_custom_call.1} parent=27 // loop_body
                %v211 = vld [vmem:[%s209] sm:$0xff]
                %212 = vst [vmem:[%s210] sm:$0xff] %v211
                %v213 = vld [vmem:[%s209 + $0x8] sm:$0xff]
                %214 = vst [vmem:[%s210 + $0x8] sm:$0xff] %v213
                %v215 = vld [vmem:[%s209 + $0x20] sm:$0xff]
                %216 = vst [vmem:[%s210 + $0x10] sm:$0xff] %v215
                %v217 = vld [vmem:[%s209 + $0x28] sm:$0xff]
                %218 = vst [vmem:[%s210 + $0x18] sm:$0xff] %v217
              $region33: #{tpu_custom_call.1} parent=27 // loop_footer
                %s208 = sadd.s32 1, %s204
              $region34: #{tpu_custom_call.1} parent=27 // loop_footer_branch
                %203 = sbr.rel target = $region30
              $region35: #{tpu_custom_call.1} parent=27 // loop_exit
                _
            $region28: #{tpu_custom_call.1} parent=23 // pred_fallthru
              _
            // Predicated region
            $region36: #{tpu_custom_call.1} parent=23 // pred_check
              _
            $region37: #{tpu_custom_call.1} parent=23 // pred_check_branch
              %220 = sbr.rel target = $region39
            $region38: #{tpu_custom_call.1} parent=23 // pred_region
              _
            $region39: #{tpu_custom_call.1} parent=23 // pred_fallthru
              _
          $region24: #{tpu_custom_call.1} parent=19 // pred_fallthru
            _
          %221 = vnop
        $region20: #{tpu_custom_call.1} parent=15 // pred_fallthru
          _
        // Predicated region
        $region40: #{tpu_custom_call.1} parent=15 // pred_check
          %p222 = pneg %p60
        $region41: #{tpu_custom_call.1} parent=15 // pred_check_branch
          %224 = sbr.rel (%p222) target = $region43
        $region42: #{tpu_custom_call.1} parent=15 // pred_region
          %s225 = sand.u32 %s50, 1
          %s226 = sand.u32 %s50, 1
          %s227 = smul.addr %s226, 16
          %s228 = scalar_lea.vmem [#allocation3], %s227
          %s229 = smul.addr %s14, 8
          %s230 = scalar_lea.vmem %s1, %s229
          // Predicated region
          $region44: #{tpu_custom_call.1} parent=42 // pred_check
            _
          $region45: #{tpu_custom_call.1} parent=42 // pred_check_branch
            %232 = sbr.rel (0) target = $region47
          $region46: #{tpu_custom_call.1} parent=42 // pred_region
            // Predicated region
            $region48: #{tpu_custom_call.1} parent=46 // pred_check
              _
            $region49: #{tpu_custom_call.1} parent=46 // pred_check_branch
              %234 = sbr.rel (0) target = $region51
            $region50: #{tpu_custom_call.1} parent=46 // pred_region
              // Predicated region
              $region63: #{tpu_custom_call.1} parent=50 // pred_check
                _
              $region64: #{tpu_custom_call.1} parent=50 // pred_check_branch
                %251 = sbr.rel (0) target = $region66
              $region65: #{tpu_custom_call.1} parent=50 // pred_region
                loop: start=0, step=1, limit=1
                $region67: #{tpu_custom_call.1} parent=65 // loop_pre_header
                  _
                $region68: #{tpu_custom_call.1} parent=65 // loop_header
                  %s253 = sphi 0, %s257
                  %p254 = scmp.ge.s32.totalorder %s253, 1
                  %s258 = sphi %s230, %s230
                  %s259 = sphi %s228, %s228
                $region69: #{tpu_custom_call.1} parent=65 // loop_header_branch
                  %256 = sbr.rel (%p254) target = $region73
                $region70: #{tpu_custom_call.1} parent=65 // loop_body
                  %v260 = vld [vmem:[%s258] sm:$0xff]
                  %261 = vst [vmem:[%s259] sm:$0xff] %v260
                  %v262 = vld [vmem:[%s258 + $0x10] sm:$0xff]
                  %263 = vst [vmem:[%s259 + $0x8] sm:$0xff] %v262
                $region71: #{tpu_custom_call.1} parent=65 // loop_footer
                  %s257 = sadd.s32 1, %s253
                $region72: #{tpu_custom_call.1} parent=65 // loop_footer_branch
                  %252 = sbr.rel target = $region68
                $region73: #{tpu_custom_call.1} parent=65 // loop_exit
                  _
              $region66: #{tpu_custom_call.1} parent=50 // pred_fallthru
                _
              // Predicated region
              $region74: #{tpu_custom_call.1} parent=50 // pred_check
                _
              $region75: #{tpu_custom_call.1} parent=50 // pred_check_branch
                %265 = sbr.rel target = $region77
              $region76: #{tpu_custom_call.1} parent=50 // pred_region
                _
              $region77: #{tpu_custom_call.1} parent=50 // pred_fallthru
                _
            $region51: #{tpu_custom_call.1} parent=46 // pred_fallthru
              _
            // Predicated region
            $region52: #{tpu_custom_call.1} parent=46 // pred_check
              _
            $region53: #{tpu_custom_call.1} parent=46 // pred_check_branch
              %236 = sbr.rel target = $region55
            $region54: #{tpu_custom_call.1} parent=46 // pred_region
              loop: start=0, step=1, limit=1
              $region56: #{tpu_custom_call.1} parent=54 // loop_pre_header
                _
              $region57: #{tpu_custom_call.1} parent=54 // loop_header
                %s239 = sphi 0, %s243
                %p240 = scmp.ge.s32.totalorder %s239, 1
                %s244 = sphi %s230, %s230
                %s245 = sphi %s228, %s228
              $region58: #{tpu_custom_call.1} parent=54 // loop_header_branch
                %242 = sbr.rel (%p240) target = $region62
              $region59: #{tpu_custom_call.1} parent=54 // loop_body
                %v246 = vld [vmem:[%s244] sm:$0xff]
                %247 = vst [vmem:[%s245] sm:$0xff] %v246
                %v248 = vld [vmem:[%s244 + $0x10] sm:$0xff]
                %249 = vst [vmem:[%s245 + $0x8] sm:$0xff] %v248
              $region60: #{tpu_custom_call.1} parent=54 // loop_footer
                %s243 = sadd.s32 1, %s239
              $region61: #{tpu_custom_call.1} parent=54 // loop_footer_branch
                %238 = sbr.rel target = $region57
              $region62: #{tpu_custom_call.1} parent=54 // loop_exit
                _
            $region55: #{tpu_custom_call.1} parent=46 // pred_fallthru
              _
          $region47: #{tpu_custom_call.1} parent=42 // pred_fallthru
            _
          %266 = vnop
        $region43: #{tpu_custom_call.1} parent=15 // pred_fallthru
          _
        // Predicated region
        $region78: #{tpu_custom_call.1} parent=15 // pred_check
          %p267 = pneg %p86
        $region79: #{tpu_custom_call.1} parent=15 // pred_check_branch
          %269 = sbr.rel (%p267) target = $region81
        $region80: #{tpu_custom_call.1} parent=15 // pred_region
          %s270 = sand.u32 %s76, 1
          %s271 = sand.u32 %s76, 1
          %s272 = smul.addr %s271, 16
          %s273 = scalar_lea.vmem [#allocation4], %s272
          %s274 = smul.addr %s14, 8
          %s275 = scalar_lea.vmem %s2, %s274
          // Predicated region
          $region82: #{tpu_custom_call.1} parent=80 // pred_check
            _
          $region83: #{tpu_custom_call.1} parent=80 // pred_check_branch
            %277 = sbr.rel (0) target = $region85
          $region84: #{tpu_custom_call.1} parent=80 // pred_region
            // Predicated region
            $region86: #{tpu_custom_call.1} parent=84 // pred_check
              _
            $region87: #{tpu_custom_call.1} parent=84 // pred_check_branch
              %279 = sbr.rel (0) target = $region89
            $region88: #{tpu_custom_call.1} parent=84 // pred_region
              // Predicated region
              $region101: #{tpu_custom_call.1} parent=88 // pred_check
                _
              $region102: #{tpu_custom_call.1} parent=88 // pred_check_branch
                %296 = sbr.rel (0) target = $region104
              $region103: #{tpu_custom_call.1} parent=88 // pred_region
                loop: start=0, step=1, limit=1
                $region105: #{tpu_custom_call.1} parent=103 // loop_pre_header
                  _
                $region106: #{tpu_custom_call.1} parent=103 // loop_header
                  %s298 = sphi 0, %s302
                  %p299 = scmp.ge.s32.totalorder %s298, 1
                  %s303 = sphi %s275, %s275
                  %s304 = sphi %s273, %s273
                $region107: #{tpu_custom_call.1} parent=103 // loop_header_branch
                  %301 = sbr.rel (%p299) target = $region111
                $region108: #{tpu_custom_call.1} parent=103 // loop_body
                  %v305 = vld [vmem:[%s303] sm:$0xff]
                  %306 = vst [vmem:[%s304] sm:$0xff] %v305
                  %v307 = vld [vmem:[%s303 + $0x10] sm:$0xff]
                  %308 = vst [vmem:[%s304 + $0x8] sm:$0xff] %v307
                $region109: #{tpu_custom_call.1} parent=103 // loop_footer
                  %s302 = sadd.s32 1, %s298
                $region110: #{tpu_custom_call.1} parent=103 // loop_footer_branch
                  %297 = sbr.rel target = $region106
                $region111: #{tpu_custom_call.1} parent=103 // loop_exit
                  _
              $region104: #{tpu_custom_call.1} parent=88 // pred_fallthru
                _
              // Predicated region
              $region112: #{tpu_custom_call.1} parent=88 // pred_check
                _
              $region113: #{tpu_custom_call.1} parent=88 // pred_check_branch
                %310 = sbr.rel target = $region115
              $region114: #{tpu_custom_call.1} parent=88 // pred_region
                _
              $region115: #{tpu_custom_call.1} parent=88 // pred_fallthru
                _
            $region89: #{tpu_custom_call.1} parent=84 // pred_fallthru
              _
            // Predicated region
            $region90: #{tpu_custom_call.1} parent=84 // pred_check
              _
            $region91: #{tpu_custom_call.1} parent=84 // pred_check_branch
              %281 = sbr.rel target = $region93
            $region92: #{tpu_custom_call.1} parent=84 // pred_region
              loop: start=0, step=1, limit=1
              $region94: #{tpu_custom_call.1} parent=92 // loop_pre_header
                _
              $region95: #{tpu_custom_call.1} parent=92 // loop_header
                %s284 = sphi 0, %s288
                %p285 = scmp.ge.s32.totalorder %s284, 1
                %s289 = sphi %s275, %s275
                %s290 = sphi %s273, %s273
              $region96: #{tpu_custom_call.1} parent=92 // loop_header_branch
                %287 = sbr.rel (%p285) target = $region100
              $region97: #{tpu_custom_call.1} parent=92 // loop_body
                %v291 = vld [vmem:[%s289] sm:$0xff]
                %292 = vst [vmem:[%s290] sm:$0xff] %v291
                %v293 = vld [vmem:[%s289 + $0x10] sm:$0xff]
                %294 = vst [vmem:[%s290 + $0x8] sm:$0xff] %v293
              $region98: #{tpu_custom_call.1} parent=92 // loop_footer
                %s288 = sadd.s32 1, %s284
              $region99: #{tpu_custom_call.1} parent=92 // loop_footer_branch
                %283 = sbr.rel target = $region95
              $region100: #{tpu_custom_call.1} parent=92 // loop_exit
                _
            $region93: #{tpu_custom_call.1} parent=84 // pred_fallthru
              _
          $region85: #{tpu_custom_call.1} parent=80 // pred_fallthru
            _
          %311 = vnop
        $region81: #{tpu_custom_call.1} parent=15 // pred_fallthru
          _
        // Predicated region
        $region116: #{tpu_custom_call.1} parent=15 // pred_check
          %p312 = pneg %p112
        $region117: #{tpu_custom_call.1} parent=15 // pred_check_branch
          %314 = sbr.rel (%p312) target = $region119
        $region118: #{tpu_custom_call.1} parent=15 // pred_region
          %p315 = scmp.lt.s32.totalorder %s14, 1
          %s316 = scalar_select %p315, %s14, 1
          %s317 = smul.addr %s316, 8
          %s318 = scalar_lea.vmem %s3, %s317
        $region119: #{tpu_custom_call.1} parent=15 // pred_fallthru
          _
        // Predicated region
        $region120: #{tpu_custom_call.1} parent=15 // pred_check
          %p319 = pneg %p138
        $region121: #{tpu_custom_call.1} parent=15 // pred_check_branch
          %321 = sbr.rel (%p319) target = $region123
        $region122: #{tpu_custom_call.1} parent=15 // pred_region
          %p322 = scmp.lt.s32.totalorder %s14, 1
          %s323 = scalar_select %p322, %s14, 1
          %s324 = smul.addr %s323, 8
          %s325 = scalar_lea.vmem %s4, %s324
        $region123: #{tpu_custom_call.1} parent=15 // pred_fallthru
          _
      $region16: #{tpu_custom_call.1} parent=5 // pred_fallthru
        _
      %p326 = scmp.le.s32.totalorder 1, %s14
      %p327 = scmp.lt.s32.totalorder %s14, 3
      %p328 = pnand %p326, %p327
      %p329 = pneg %p328
      // Predicated region
      $region124: #{tpu_custom_call.1} parent=5 // pred_check
        _
      $region125: #{tpu_custom_call.1} parent=5 // pred_check_branch
        %331 = sbr.rel (%p328) target = $region127
      $region126: #{tpu_custom_call.1} parent=5 // pred_region
        %s332 = ssub.s32 %s14, 1
        %s333 = sand.u32 %s27, 1
        %s334 = sand.u32 %s27, 1
        %s335 = smul.addr %s334, 32
        %s336 = scalar_lea.vmem [#allocation2], %s335
        // Predicated region
        $region128: #{tpu_custom_call.1} parent=126 // pred_check
          %p337 = pneg %p40
        $region129: #{tpu_custom_call.1} parent=126 // pred_check_branch
          %339 = sbr.rel (%p337) target = $region131
        $region130: #{tpu_custom_call.1} parent=126 // pred_region
          _
        $region131: #{tpu_custom_call.1} parent=126 // pred_fallthru
          _
        %s340 = sand.u32 %s53, 1
        %s341 = sand.u32 %s53, 1
        %s342 = smul.addr %s341, 16
        %s343 = scalar_lea.vmem [#allocation3], %s342
        // Predicated region
        $region132: #{tpu_custom_call.1} parent=126 // pred_check
          %p344 = pneg %p66
        $region133: #{tpu_custom_call.1} parent=126 // pred_check_branch
          %346 = sbr.rel (%p344) target = $region135
        $region134: #{tpu_custom_call.1} parent=126 // pred_region
          _
        $region135: #{tpu_custom_call.1} parent=126 // pred_fallthru
          _
        %s347 = sand.u32 %s79, 1
        %s348 = sand.u32 %s79, 1
        %s349 = smul.addr %s348, 16
        %s350 = scalar_lea.vmem [#allocation4], %s349
        // Predicated region
        $region136: #{tpu_custom_call.1} parent=126 // pred_check
          %p351 = pneg %p92
        $region137: #{tpu_custom_call.1} parent=126 // pred_check_branch
          %353 = sbr.rel (%p351) target = $region139
        $region138: #{tpu_custom_call.1} parent=126 // pred_region
          _
        $region139: #{tpu_custom_call.1} parent=126 // pred_fallthru
          _
        %s354 = sand.u32 %s27, 1
        %s355 = sand.u32 %s27, 1
        %s356 = smul.addr %s355, 32
        %s357 = scalar_lea.vmem [#allocation2], %s356
        %p358 = pneg %p40
        %p359 = pneg %p37
        %s360 = sand.u32 %s53, 1
        %s361 = sand.u32 %s53, 1
        %s362 = smul.addr %s361, 16
        %s363 = scalar_lea.vmem [#allocation3], %s362
        %p364 = pneg %p66
        %p365 = pneg %p63
        %s366 = sand.u32 %s79, 1
        %s367 = sand.u32 %s79, 1
        %s368 = smul.addr %s367, 16
        %s369 = scalar_lea.vmem [#allocation4], %s368
        %p370 = pneg %p92
        %p371 = pneg %p89
        %p372 = scmp.lt.s32.totalorder %s19, 1
        %s373 = scalar_select %p372, %s19, 1
        %s374 = smul.addr %s373, 8
        %s375 = scalar_lea.vmem %s3, %s374
        %p376 = pneg %p118
        %p377 = pneg %p115
        %p378 = scmp.lt.s32.totalorder %s19, 1
        %s379 = scalar_select %p378, %s19, 1
        %s380 = smul.addr %s379, 8
        %s381 = scalar_lea.vmem %s4, %s380
        %p382 = pneg %p144
        %p383 = pneg %p141
        %p384 = pneg %p170
        %p385 = pneg %p167
        %s386 = sand.u32 %s157, 1
        %s387 = scalar_lea.sflag [#allocation6], %s386
        %s388 = sand.u32 %s157, 1
        %s389 = smul.addr %s388, 32
        %s390 = scalar_lea.vmem [#allocation5], %s389
        %p391 = scmp.lt.s32.totalorder %s19, 1
        %s392 = scalar_select %p391, %s19, 1
        %s393 = smul.addr %s392, 8
        %s394 = scalar_lea.vmem %s3, %s393
        %p395 = scmp.lt.s32.totalorder %s19, 1
        %s396 = scalar_select %p395, %s19, 1
        %s397 = smul.addr %s396, 8
        %s398 = scalar_lea.vmem %s4, %s397
        %v399 = vld [vmem:[%s336] sm:$0xff]
        %v400 = vld [vmem:[%s336 + $0x8] sm:$0xff]
        %v401 = vld [vmem:[%s336 + $0x10] sm:$0xff]
        %v402 = vld [vmem:[%s336 + $0x18] sm:$0xff]
        %v403 = vadd.f32 %v399, %v400
        %404 = vadd.xlane.f32.xlu0 %v403
        %v405 = vpop.xlane.xlu0 %404
        %v406 = vadd.f32 %v401, %v402
        %407 = vadd.xlane.f32.xlu0 %v406
        %v408 = vpop.xlane.xlu0 %407
        %v409 = vadd.f32 %v405, %v408
        %v410 = vmul.f32 %v399, %v399
        %v411 = vmul.f32 %v400, %v400
        %v412 = vmul.f32 %v401, %v401
        %v413 = vmul.f32 %v402, %v402
        %v414 = vadd.f32 %v410, %v411
        %415 = vadd.xlane.f32.xlu0 %v414
        %v416 = vpop.xlane.xlu0 %415
        %v417 = vadd.f32 %v412, %v413
        %418 = vadd.xlane.f32.xlu0 %v417
        %v419 = vpop.xlane.xlu0 %418
        %v420 = vadd.f32 %v416, %v419
        %v421 = vmul.f32 %v409, 0.001953125
        %v422 = vmul.f32 %v420, 0.001953125
        %v423 = vmul.f32 %v421, %v421
        %v424 = vsub.f32 %v422, %v423
        %v425 = vmax.f32 %v424, 0.0
        %v426 = vadd.f32 %v425, 1e-08
        %v427 = vrsqrt.pop %v426
        %v428 = vld [vmem:[%s394] sm:$0xff]
        %v429 = vmul.f32 %v428, %v427
        %v430 = vld [vmem:[%s343] sm:$0xff]
        %v431 = vld [vmem:[%s343 + $0x8] sm:$0xff]
        %v432 = vld [vmem:[%s350] sm:$0xff]
        %v433 = vld [vmem:[%s350 + $0x8] sm:$0xff]
        %v434 = vmul.f32 %v430, %v429
        %v435 = vmul.f32 %v431, %v429
        %v436 = vld [vmem:[%s398] sm:$0xff]
        %v437 = vmul.f32 %v421, %v429
        %v438 = vsub.f32 %v436, %v437
        %v439 = vmul.f32 %v430, %v438
        %v440 = vmul.f32 %v431, %v438
        %v441 = vadd.f32 %v432, %v439
        %v442 = vadd.f32 %v433, %v440
        %v443 = vmul.f32 %v434, 0.7
        %v444 = vmul.f32 %v435, 0.7
        %v445 = vadd.f32 %v443, 0.3
        %v446 = vadd.f32 %v444, 0.3
        %v447 = vmul.f32 %v441, 0.7
        %v448 = vmul.f32 %v442, 0.7
        %450 = vset.pattern.permute.xlu0 0
        %451 = vperm.xlu0 %450, %v445
        %v452 = vpop.permute.xlu0 %451
        %455 = vset.pattern.permute.xlu0 0
        %456 = vperm.xlu0 %455, %v446
        %v457 = vpop.permute.xlu0 %456
        %v459 = vmul.f32 %v399, %v452
        %v460 = vmul.f32 %v400, %v452
        %v461 = vmul.f32 %v401, %v457
        %v462 = vmul.f32 %v402, %v457
        %464 = vset.pattern.permute.xlu0 0
        %465 = vperm.xlu0 %464, %v447
        %v466 = vpop.permute.xlu0 %465
        %469 = vset.pattern.permute.xlu0 0
        %470 = vperm.xlu0 %469, %v448
        %v471 = vpop.permute.xlu0 %470
        %v473 = vadd.f32 %v459, %v466
        %v474 = vadd.f32 %v460, %v466
        %v475 = vadd.f32 %v461, %v471
        %v476 = vadd.f32 %v462, %v471
        %477 = vst [vmem:[%s390] sm:$0xff] %v473
        %478 = vst [vmem:[%s390 + $0x8] sm:$0xff] %v474
        %479 = vst [vmem:[%s390 + $0x10] sm:$0xff] %v475
        %480 = vst [vmem:[%s390 + $0x18] sm:$0xff] %v476
        %s481 = sand.u32 %s157, 1
        %s482 = scalar_lea.sflag [#allocation6], %s481
        %s483 = sand.u32 %s157, 1
        %s484 = smul.addr %s483, 32
        %s485 = scalar_lea.vmem [#allocation5], %s484
        // Predicated region
        $region140: #{tpu_custom_call.1} parent=126 // pred_check
          %p486 = pneg %p167
        $region141: #{tpu_custom_call.1} parent=126 // pred_check_branch
          %488 = sbr.rel (%p486) target = $region143
        $region142: #{tpu_custom_call.1} parent=126 // pred_region
          %s490 = ssub.s32 512, 512
          %491 = vsyncadd %s482, %s490
          %s492 = smul.addr %s19, 2
          %s493 = smul.addr %s492, 128
          %s494 = scalar_lea.hbm %s5, %s493
          %s495 = sshll.u32 %s485, 4
          %s496 = int_to_ptr.vmem [resolvable:$true] %s495
          %501 = dma.vmem_to_hbm [thread:$0]  %s496, 512, %s494, %s482, 256, 512, 16
        $region143: #{tpu_custom_call.1} parent=126 // pred_fallthru
          _
      $region127: #{tpu_custom_call.1} parent=5 // pred_fallthru
        _
      %p502 = scmp.le.s32.totalorder 2, %s14
      // Predicated region
      $region144: #{tpu_custom_call.1} parent=5 // pred_check
        %p503 = pneg %p502
      $region145: #{tpu_custom_call.1} parent=5 // pred_check_branch
        %505 = sbr.rel (%p503) target = $region147
      $region146: #{tpu_custom_call.1} parent=5 // pred_region
        %s506 = ssub.s32 %s14, 2
        // Predicated region
        $region148: #{tpu_custom_call.1} parent=146 // pred_check
          %p507 = pneg %p173
        $region149: #{tpu_custom_call.1} parent=146 // pred_check_branch
          %509 = sbr.rel (%p507) target = $region151
        $region150: #{tpu_custom_call.1} parent=146 // pred_region
          %s510 = sand.u32 %s158, 1
          %s511 = scalar_lea.sflag [#allocation6], %s510
          %s512 = sand.u32 %s158, 1
          %s513 = smul.addr %s512, 32
          %s514 = scalar_lea.vmem [#allocation5], %s513
          %515 = dma.done %s511, 512
        $region151: #{tpu_custom_call.1} parent=146 // pred_fallthru
          _
      $region147: #{tpu_custom_call.1} parent=5 // pred_fallthru
        _
    $region6: #{tpu_custom_call.1} parent=1 // loop_footer
      %s18 = sadd.s32 1, %s14
    $region7: #{tpu_custom_call.1} parent=1 // loop_footer_branch
      %13 = sbr.rel target = $region3
    $region8: #{tpu_custom_call.1} parent=1 // loop_exit
      _
    %516 = vsyncpa [#allocation6], 1
    %s517 = scalar_lea.sflag [#allocation6], 1
    %518 = vsyncpa %s517, 1

</llo_original>
